<compile_context>
chip_gen: v5e
topology: v5e:2x2
jax: 0.10.0
libtpu: 0.0.40
codegen_flags: <defaults>
</compile_context>

<pallas_src>
import jax
import jax.numpy as jnp
from jax import lax
from jax.experimental import pallas as pl
from jax.experimental.pallas import tpu as pltpu


def _make_conv_block_kernel(Cin, H, W, Cout, KH, KW):
    pad = KH // 2
    WP = W + 2 * pad                    # padded width = row stride of flat image
    MI = H * WP                         # GEMM lane dim (includes WP-stride junk cols)
    K = Cin * KH * KW                   # contraction dim, ordered (kh, kw, ci)
    FLAT = (((KH - 1) * WP + (KW - 1) + MI) + 127) // 128 * 128   # scratch width

    def kernel(x_ref, w_ref, b_ref, o_ref, xflat_ref, patch_ref):
        # x_ref   : (1, Cin, H, W)   f32  one batch element (raw, unpadded)
        # w_ref   : (Cout, K)        f32  (kh, kw, ci)-ordered conv weights
        # b_ref   : (Cout, 1)        f32  bias
        # o_ref   : (1, Cout, H*W)   f32  lane-dense output block
        # xflat   : (Cin, FLAT)      f32  zero-padded image, rows flattened
        # patch   : (K, MI)          f32  in-kernel im2col matrix

        # 1) Halo handled in-kernel: zero the flat scratch, copy interior rows.
        xflat_ref[...] = jnp.zeros_like(xflat_ref)
        xv = x_ref[0]                                    # (Cin, H, W)
        for h in range(H):
            off = (h + pad) * WP + pad
            xflat_ref[:, off:off + W] = xv[:, h, :]

        # 2) im2col: each (kh, kw) row-block of the patch matrix is ONE
        #    contiguous shifted slice of the flattened padded image.
        for kh in range(KH):
            for kw in range(KW):
                koff = (kh * KW + kw) * Cin
                src = kh * WP + kw
                patch_ref[koff:koff + Cin, :] = xflat_ref[:, src:src + MI]

        # 3) Single lane-dense GEMM on the MXU, f32 accumulation,
        #    f32 bias + ReLU epilogue on the VPU (free slots under the matmul).
        acc = jnp.dot(w_ref[...], patch_ref[...],
                      preferred_element_type=jnp.float32)
        acc = jnp.maximum(acc + b_ref[...], 0.0)

        # 4) Drop the WP-stride junk columns while storing; output block stays
        #    lane-dense (H*W = 256 lanes -> unmasked-friendly stores).
        for h in range(H):
            o_ref[0, :, h * W:(h + 1) * W] = acc[:, h * WP:h * WP + W]

    return kernel, K, MI, FLAT


def conv_block_forward(x_nchw, w_oihw, b, *, stride=1):
    """relu(conv2d(x, w, stride=1, padding=k//2) + b) — NCHW in / NCHW out."""
    assert stride == 1, "module default stride=1"
    N, Cin, H, W = x_nchw.shape
    Cout, Cin_w, KH, KW = w_oihw.shape
    assert Cin == Cin_w
    assert KH == KW and KH % 2 == 1       # module assumes square, odd kernel
    HW = H * W

    kernel, K, MI, FLAT = _make_conv_block_kernel(Cin, H, W, Cout, KH, KW)

    # Only wrapper-side prep: reorder the ~1 KB weights to the kernel's
    # (kh, kw, ci) contraction order and give the bias a lane dim.  All the
    # heavy data (x, output) flows through pallas_call untouched.
    wmat = w_oihw.transpose(0, 2, 3, 1).reshape(Cout, K).astype(jnp.float32)
    bvec = b.reshape(Cout, 1).astype(jnp.float32)

    out = pl.pallas_call(
        kernel,
        out_shape=jax.ShapeDtypeStruct((N, Cout, HW), jnp.float32),
        grid_spec=pltpu.PrefetchScalarGridSpec(
            num_scalar_prefetch=0,
            grid=(N,),                     # one batch element per grid step
            in_specs=[
                pl.BlockSpec((1, Cin, H, W), lambda n: (n, 0, 0, 0)),
                pl.BlockSpec((Cout, K), lambda n: (0, 0)),
                pl.BlockSpec((Cout, 1), lambda n: (0, 0)),
            ],
            out_specs=pl.BlockSpec((1, Cout, HW), lambda n: (n, 0, 0)),
            scratch_shapes=[
                pltpu.VMEM((Cin, FLAT), jnp.float32),   # flat padded image
                pltpu.VMEM((K, MI), jnp.float32),       # im2col patch matrix
            ],
        ),
        compiler_params=pltpu.CompilerParams(
            dimension_semantics=("parallel",)),   # shards over v7x's 2 TCs
    )(x_nchw.astype(jnp.float32), wmat, bvec)

    # Free metadata reshape only — no transpose / slice kernels in the wrapper.
    return out.reshape(N, Cout, H, W).astype(x_nchw.dtype)


if __name__ == "__main__":
    # Shapes consistent with ConvBlock(in_channels=4, filter_size=8, kernel_size=3).
    N, Cin, H, W = 2, 4, 16, 16
    Cout, Ksz = 8, 3

    key = jax.random.PRNGKey(0)
    kx, kw, kb = jax.random.split(key, 3)

    x = jax.random.normal(kx, (N, Cin, H, W), dtype=jnp.float32)

    # nn.Conv2d-style uniform init followed by the module's `weight *= sqrt(2)`.
    fan_in = Cin * Ksz * Ksz
    bound = 1.0 / jnp.sqrt(fan_in)
    w = jax.random.uniform(kw, (Cout, Cin, Ksz, Ksz), minval=-bound,
                           maxval=bound, dtype=jnp.float32)
    w = w * jnp.sqrt(2.0)
    b = jax.random.uniform(kb, (Cout,), minval=-bound, maxval=bound,
                           dtype=jnp.float32)

    out = jax.block_until_ready(jax.jit(conv_block_forward)(x, w, b))

    # Pure-JAX f32 reference (same semantics as F.conv2d + ReLU, NCHW).
    ref = lax.conv_general_dilated(
        x, w, window_strides=(1, 1),
        padding=[(Ksz // 2, Ksz // 2), (Ksz // 2, Ksz // 2)],
        dimension_numbers=("NCHW", "OIHW", "NCHW"))
    ref = jnp.maximum(ref + b[None, :, None, None], 0.0)

    assert out.shape == (N, Cout, H, W)
    # All-f32 path: expected error ~1e-6; tolerance kept loose for robustness
    # across MXU f32-precision modes.
    assert jnp.allclose(out, ref, atol=2e-2, rtol=2e-2)
    print("KERNEL_OK")
</pallas_src>

<mosaic_0001>
module attributes {stable_mosaic.version = 11 : i64} {
  func.func @kernel(%arg0: i32, %arg1: memref<1x4x16x16xf32, #tpu.memory_space<vmem>>, %arg2: memref<8x36xf32, #tpu.memory_space<vmem>>, %arg3: memref<8x1xf32, #tpu.memory_space<vmem>>, %arg4: memref<1x8x256xf32, #tpu.memory_space<vmem>>, %arg5: memref<4x384xf32, #tpu.memory_space<vmem>>, %arg6: memref<36x288xf32, #tpu.memory_space<vmem>>) attributes {dimension_semantics = [#tpu.dimension_semantics<parallel>], iteration_bounds = array<i64: 2>, scalar_prefetch = 0 : i64, scratch_operands = 2 : i64, tpu.core_type = #tpu.core_type<tc>, window_params = [{transform_indices = @transform_0, window_bounds = array<i64: 1, 4, 16, 16>}, {pipeline_mode = #tpu.pipeline_mode<synchronous>, transform_indices = @transform_1, window_bounds = array<i64: 8, 36>}, {pipeline_mode = #tpu.pipeline_mode<synchronous>, transform_indices = @transform_2, window_bounds = array<i64: 8, 1>}, {transform_indices = @transform_3, window_bounds = array<i64: 1, 8, 256>}]} {
    %cst = arith.constant 0.000000e+00 : f32
    %0 = vector.broadcast %cst : f32 to vector<4x384xf32>
    %c0 = arith.constant 0 : index
    %c0_0 = arith.constant 0 : index
    %1 = vector.load %arg5[%c0, %c0_0] : memref<4x384xf32, #tpu.memory_space<vmem>>, vector<4x384xf32>
    tpu.vector_store %arg5[%c0, %c0_0], %0 {strides = array<i32>} : memref<4x384xf32, #tpu.memory_space<vmem>>, vector<4x384xf32>,
    %c0_1 = arith.constant 0 : index
    %c0_2 = arith.constant 0 : index
    %c0_3 = arith.constant 0 : index
    %c0_4 = arith.constant 0 : index
    %2 = vector.load %arg1[%c0_1, %c0_2, %c0_3, %c0_4] : memref<1x4x16x16xf32, #tpu.memory_space<vmem>>, vector<1x4x16x16xf32>
    %3 = vector.shape_cast %2 : vector<1x4x16x16xf32> to vector<4x16x16xf32>
    %4 = vector.extract_strided_slice %3 {offsets = [0, 0, 0], sizes = [4, 1, 16], strides = [1, 1, 1]} : vector<4x16x16xf32> to vector<4x1x16xf32>
    %5 = vector.shape_cast %4 : vector<4x1x16xf32> to vector<4x16xf32>
    %c0_5 = arith.constant 0 : index
    %c19 = arith.constant 19 : index
    %6 = vector.load %arg5[%c0_5, %c19] : memref<4x384xf32, #tpu.memory_space<vmem>>, vector<4x16xf32>
    tpu.vector_store %arg5[%c0_5, %c19], %5 {strides = array<i32>} : memref<4x384xf32, #tpu.memory_space<vmem>>, vector<4x16xf32>,
    %7 = vector.extract_strided_slice %3 {offsets = [0, 1, 0], sizes = [4, 1, 16], strides = [1, 1, 1]} : vector<4x16x16xf32> to vector<4x1x16xf32>
    %8 = vector.shape_cast %7 : vector<4x1x16xf32> to vector<4x16xf32>
    %c0_6 = arith.constant 0 : index
    %c37 = arith.constant 37 : index
    %9 = vector.load %arg5[%c0_6, %c37] : memref<4x384xf32, #tpu.memory_space<vmem>>, vector<4x16xf32>
    tpu.vector_store %arg5[%c0_6, %c37], %8 {strides = array<i32>} : memref<4x384xf32, #tpu.memory_space<vmem>>, vector<4x16xf32>,
    %10 = vector.extract_strided_slice %3 {offsets = [0, 2, 0], sizes = [4, 1, 16], strides = [1, 1, 1]} : vector<4x16x16xf32> to vector<4x1x16xf32>
    %11 = vector.shape_cast %10 : vector<4x1x16xf32> to vector<4x16xf32>
    %c0_7 = arith.constant 0 : index
    %c55 = arith.constant 55 : index
    %12 = vector.load %arg5[%c0_7, %c55] : memref<4x384xf32, #tpu.memory_space<vmem>>, vector<4x16xf32>
    tpu.vector_store %arg5[%c0_7, %c55], %11 {strides = array<i32>} : memref<4x384xf32, #tpu.memory_space<vmem>>, vector<4x16xf32>,
    %13 = vector.extract_strided_slice %3 {offsets = [0, 3, 0], sizes = [4, 1, 16], strides = [1, 1, 1]} : vector<4x16x16xf32> to vector<4x1x16xf32>
    %14 = vector.shape_cast %13 : vector<4x1x16xf32> to vector<4x16xf32>
    %c0_8 = arith.constant 0 : index
    %c73 = arith.constant 73 : index
    %15 = vector.load %arg5[%c0_8, %c73] : memref<4x384xf32, #tpu.memory_space<vmem>>, vector<4x16xf32>
    tpu.vector_store %arg5[%c0_8, %c73], %14 {strides = array<i32>} : memref<4x384xf32, #tpu.memory_space<vmem>>, vector<4x16xf32>,
    %16 = vector.extract_strided_slice %3 {offsets = [0, 4, 0], sizes = [4, 1, 16], strides = [1, 1, 1]} : vector<4x16x16xf32> to vector<4x1x16xf32>
    %17 = vector.shape_cast %16 : vector<4x1x16xf32> to vector<4x16xf32>
    %c0_9 = arith.constant 0 : index
    %c91 = arith.constant 91 : index
    %18 = vector.load %arg5[%c0_9, %c91] : memref<4x384xf32, #tpu.memory_space<vmem>>, vector<4x16xf32>
    tpu.vector_store %arg5[%c0_9, %c91], %17 {strides = array<i32>} : memref<4x384xf32, #tpu.memory_space<vmem>>, vector<4x16xf32>,
    %19 = vector.extract_strided_slice %3 {offsets = [0, 5, 0], sizes = [4, 1, 16], strides = [1, 1, 1]} : vector<4x16x16xf32> to vector<4x1x16xf32>
    %20 = vector.shape_cast %19 : vector<4x1x16xf32> to vector<4x16xf32>
    %c0_10 = arith.constant 0 : index
    %c109 = arith.constant 109 : index
    %21 = vector.load %arg5[%c0_10, %c109] : memref<4x384xf32, #tpu.memory_space<vmem>>, vector<4x16xf32>
    tpu.vector_store %arg5[%c0_10, %c109], %20 {strides = array<i32>} : memref<4x384xf32, #tpu.memory_space<vmem>>, vector<4x16xf32>,
    %22 = vector.extract_strided_slice %3 {offsets = [0, 6, 0], sizes = [4, 1, 16], strides = [1, 1, 1]} : vector<4x16x16xf32> to vector<4x1x16xf32>
    %23 = vector.shape_cast %22 : vector<4x1x16xf32> to vector<4x16xf32>
    %c0_11 = arith.constant 0 : index
    %c127 = arith.constant 127 : index
    %24 = vector.load %arg5[%c0_11, %c127] : memref<4x384xf32, #tpu.memory_space<vmem>>, vector<4x16xf32>
    tpu.vector_store %arg5[%c0_11, %c127], %23 {strides = array<i32>} : memref<4x384xf32, #tpu.memory_space<vmem>>, vector<4x16xf32>,
    %25 = vector.extract_strided_slice %3 {offsets = [0, 7, 0], sizes = [4, 1, 16], strides = [1, 1, 1]} : vector<4x16x16xf32> to vector<4x1x16xf32>
    %26 = vector.shape_cast %25 : vector<4x1x16xf32> to vector<4x16xf32>
    %c0_12 = arith.constant 0 : index
    %c145 = arith.constant 145 : index
    %27 = vector.load %arg5[%c0_12, %c145] : memref<4x384xf32, #tpu.memory_space<vmem>>, vector<4x16xf32>
    tpu.vector_store %arg5[%c0_12, %c145], %26 {strides = array<i32>} : memref<4x384xf32, #tpu.memory_space<vmem>>, vector<4x16xf32>,
    %28 = vector.extract_strided_slice %3 {offsets = [0, 8, 0], sizes = [4, 1, 16], strides = [1, 1, 1]} : vector<4x16x16xf32> to vector<4x1x16xf32>
    %29 = vector.shape_cast %28 : vector<4x1x16xf32> to vector<4x16xf32>
    %c0_13 = arith.constant 0 : index
    %c163 = arith.constant 163 : index
    %30 = vector.load %arg5[%c0_13, %c163] : memref<4x384xf32, #tpu.memory_space<vmem>>, vector<4x16xf32>
    tpu.vector_store %arg5[%c0_13, %c163], %29 {strides = array<i32>} : memref<4x384xf32, #tpu.memory_space<vmem>>, vector<4x16xf32>,
    %31 = vector.extract_strided_slice %3 {offsets = [0, 9, 0], sizes = [4, 1, 16], strides = [1, 1, 1]} : vector<4x16x16xf32> to vector<4x1x16xf32>
    %32 = vector.shape_cast %31 : vector<4x1x16xf32> to vector<4x16xf32>
    %c0_14 = arith.constant 0 : index
    %c181 = arith.constant 181 : index
    %33 = vector.load %arg5[%c0_14, %c181] : memref<4x384xf32, #tpu.memory_space<vmem>>, vector<4x16xf32>
    tpu.vector_store %arg5[%c0_14, %c181], %32 {strides = array<i32>} : memref<4x384xf32, #tpu.memory_space<vmem>>, vector<4x16xf32>,
    %34 = vector.extract_strided_slice %3 {offsets = [0, 10, 0], sizes = [4, 1, 16], strides = [1, 1, 1]} : vector<4x16x16xf32> to vector<4x1x16xf32>
    %35 = vector.shape_cast %34 : vector<4x1x16xf32> to vector<4x16xf32>
    %c0_15 = arith.constant 0 : index
    %c199 = arith.constant 199 : index
    %36 = vector.load %arg5[%c0_15, %c199] : memref<4x384xf32, #tpu.memory_space<vmem>>, vector<4x16xf32>
    tpu.vector_store %arg5[%c0_15, %c199], %35 {strides = array<i32>} : memref<4x384xf32, #tpu.memory_space<vmem>>, vector<4x16xf32>,
    %37 = vector.extract_strided_slice %3 {offsets = [0, 11, 0], sizes = [4, 1, 16], strides = [1, 1, 1]} : vector<4x16x16xf32> to vector<4x1x16xf32>
    %38 = vector.shape_cast %37 : vector<4x1x16xf32> to vector<4x16xf32>
    %c0_16 = arith.constant 0 : index
    %c217 = arith.constant 217 : index
    %39 = vector.load %arg5[%c0_16, %c217] : memref<4x384xf32, #tpu.memory_space<vmem>>, vector<4x16xf32>
    tpu.vector_store %arg5[%c0_16, %c217], %38 {strides = array<i32>} : memref<4x384xf32, #tpu.memory_space<vmem>>, vector<4x16xf32>,
    %40 = vector.extract_strided_slice %3 {offsets = [0, 12, 0], sizes = [4, 1, 16], strides = [1, 1, 1]} : vector<4x16x16xf32> to vector<4x1x16xf32>
    %41 = vector.shape_cast %40 : vector<4x1x16xf32> to vector<4x16xf32>
    %c0_17 = arith.constant 0 : index
    %c235 = arith.constant 235 : index
    %42 = vector.load %arg5[%c0_17, %c235] : memref<4x384xf32, #tpu.memory_space<vmem>>, vector<4x16xf32>
    tpu.vector_store %arg5[%c0_17, %c235], %41 {strides = array<i32>} : memref<4x384xf32, #tpu.memory_space<vmem>>, vector<4x16xf32>,
    %43 = vector.extract_strided_slice %3 {offsets = [0, 13, 0], sizes = [4, 1, 16], strides = [1, 1, 1]} : vector<4x16x16xf32> to vector<4x1x16xf32>
    %44 = vector.shape_cast %43 : vector<4x1x16xf32> to vector<4x16xf32>
    %c0_18 = arith.constant 0 : index
    %c253 = arith.constant 253 : index
    %45 = vector.load %arg5[%c0_18, %c253] : memref<4x384xf32, #tpu.memory_space<vmem>>, vector<4x16xf32>
    tpu.vector_store %arg5[%c0_18, %c253], %44 {strides = array<i32>} : memref<4x384xf32, #tpu.memory_space<vmem>>, vector<4x16xf32>,
    %46 = vector.extract_strided_slice %3 {offsets = [0, 14, 0], sizes = [4, 1, 16], strides = [1, 1, 1]} : vector<4x16x16xf32> to vector<4x1x16xf32>
    %47 = vector.shape_cast %46 : vector<4x1x16xf32> to vector<4x16xf32>
    %c0_19 = arith.constant 0 : index
    %c271 = arith.constant 271 : index
    %48 = vector.load %arg5[%c0_19, %c271] : memref<4x384xf32, #tpu.memory_space<vmem>>, vector<4x16xf32>
    tpu.vector_store %arg5[%c0_19, %c271], %47 {strides = array<i32>} : memref<4x384xf32, #tpu.memory_space<vmem>>, vector<4x16xf32>,
    %49 = vector.extract_strided_slice %3 {offsets = [0, 15, 0], sizes = [4, 1, 16], strides = [1, 1, 1]} : vector<4x16x16xf32> to vector<4x1x16xf32>
    %50 = vector.shape_cast %49 : vector<4x1x16xf32> to vector<4x16xf32>
    %c0_20 = arith.constant 0 : index
    %c289 = arith.constant 289 : index
    %51 = vector.load %arg5[%c0_20, %c289] : memref<4x384xf32, #tpu.memory_space<vmem>>, vector<4x16xf32>
    tpu.vector_store %arg5[%c0_20, %c289], %50 {strides = array<i32>} : memref<4x384xf32, #tpu.memory_space<vmem>>, vector<4x16xf32>,
    %c0_21 = arith.constant 0 : index
    %c0_22 = arith.constant 0 : index
    %52 = vector.load %arg5[%c0_21, %c0_22] : memref<4x384xf32, #tpu.memory_space<vmem>>, vector<4x288xf32>
    %c0_23 = arith.constant 0 : index
    %c0_24 = arith.constant 0 : index
    %53 = vector.load %arg6[%c0_23, %c0_24] : memref<36x288xf32, #tpu.memory_space<vmem>>, vector<4x288xf32>
    tpu.vector_store %arg6[%c0_23, %c0_24], %52 {strides = array<i32>} : memref<36x288xf32, #tpu.memory_space<vmem>>, vector<4x288xf32>,
    %c0_25 = arith.constant 0 : index
    %c1 = arith.constant 1 : index
    %54 = vector.load %arg5[%c0_25, %c1] : memref<4x384xf32, #tpu.memory_space<vmem>>, vector<4x288xf32>
    %c4 = arith.constant 4 : index
    %c0_26 = arith.constant 0 : index
    %55 = vector.load %arg6[%c4, %c0_26] : memref<36x288xf32, #tpu.memory_space<vmem>>, vector<4x288xf32>
    tpu.vector_store %arg6[%c4, %c0_26], %54 {strides = array<i32>} : memref<36x288xf32, #tpu.memory_space<vmem>>, vector<4x288xf32>,
    %c0_27 = arith.constant 0 : index
    %c2 = arith.constant 2 : index
    %56 = vector.load %arg5[%c0_27, %c2] : memref<4x384xf32, #tpu.memory_space<vmem>>, vector<4x288xf32>
    %c8 = arith.constant 8 : index
    %c0_28 = arith.constant 0 : index
    %57 = vector.load %arg6[%c8, %c0_28] : memref<36x288xf32, #tpu.memory_space<vmem>>, vector<4x288xf32>
    tpu.vector_store %arg6[%c8, %c0_28], %56 {strides = array<i32>} : memref<36x288xf32, #tpu.memory_space<vmem>>, vector<4x288xf32>,
    %c0_29 = arith.constant 0 : index
    %c18 = arith.constant 18 : index
    %58 = vector.load %arg5[%c0_29, %c18] : memref<4x384xf32, #tpu.memory_space<vmem>>, vector<4x288xf32>
    %c12 = arith.constant 12 : index
    %c0_30 = arith.constant 0 : index
    %59 = vector.load %arg6[%c12, %c0_30] : memref<36x288xf32, #tpu.memory_space<vmem>>, vector<4x288xf32>
    tpu.vector_store %arg6[%c12, %c0_30], %58 {strides = array<i32>} : memref<36x288xf32, #tpu.memory_space<vmem>>, vector<4x288xf32>,
    %c0_31 = arith.constant 0 : index
    %c19_32 = arith.constant 19 : index
    %60 = vector.load %arg5[%c0_31, %c19_32] : memref<4x384xf32, #tpu.memory_space<vmem>>, vector<4x288xf32>
    %c16 = arith.constant 16 : index
    %c0_33 = arith.constant 0 : index
    %61 = vector.load %arg6[%c16, %c0_33] : memref<36x288xf32, #tpu.memory_space<vmem>>, vector<4x288xf32>
    tpu.vector_store %arg6[%c16, %c0_33], %60 {strides = array<i32>} : memref<36x288xf32, #tpu.memory_space<vmem>>, vector<4x288xf32>,
    %c0_34 = arith.constant 0 : index
    %c20 = arith.constant 20 : index
    %62 = vector.load %arg5[%c0_34, %c20] : memref<4x384xf32, #tpu.memory_space<vmem>>, vector<4x288xf32>
    %c20_35 = arith.constant 20 : index
    %c0_36 = arith.constant 0 : index
    %63 = vector.load %arg6[%c20_35, %c0_36] : memref<36x288xf32, #tpu.memory_space<vmem>>, vector<4x288xf32>
    tpu.vector_store %arg6[%c20_35, %c0_36], %62 {strides = array<i32>} : memref<36x288xf32, #tpu.memory_space<vmem>>, vector<4x288xf32>,
    %c0_37 = arith.constant 0 : index
    %c36 = arith.constant 36 : index
    %64 = vector.load %arg5[%c0_37, %c36] : memref<4x384xf32, #tpu.memory_space<vmem>>, vector<4x288xf32>
    %c24 = arith.constant 24 : index
    %c0_38 = arith.constant 0 : index
    %65 = vector.load %arg6[%c24, %c0_38] : memref<36x288xf32, #tpu.memory_space<vmem>>, vector<4x288xf32>
    tpu.vector_store %arg6[%c24, %c0_38], %64 {strides = array<i32>} : memref<36x288xf32, #tpu.memory_space<vmem>>, vector<4x288xf32>,
    %c0_39 = arith.constant 0 : index
    %c37_40 = arith.constant 37 : index
    %66 = vector.load %arg5[%c0_39, %c37_40] : memref<4x384xf32, #tpu.memory_space<vmem>>, vector<4x288xf32>
    %c28 = arith.constant 28 : index
    %c0_41 = arith.constant 0 : index
    %67 = vector.load %arg6[%c28, %c0_41] : memref<36x288xf32, #tpu.memory_space<vmem>>, vector<4x288xf32>
    tpu.vector_store %arg6[%c28, %c0_41], %66 {strides = array<i32>} : memref<36x288xf32, #tpu.memory_space<vmem>>, vector<4x288xf32>,
    %c0_42 = arith.constant 0 : index
    %c38 = arith.constant 38 : index
    %68 = vector.load %arg5[%c0_42, %c38] : memref<4x384xf32, #tpu.memory_space<vmem>>, vector<4x288xf32>
    %c32 = arith.constant 32 : index
    %c0_43 = arith.constant 0 : index
    %69 = vector.load %arg6[%c32, %c0_43] : memref<36x288xf32, #tpu.memory_space<vmem>>, vector<4x288xf32>
    tpu.vector_store %arg6[%c32, %c0_43], %68 {strides = array<i32>} : memref<36x288xf32, #tpu.memory_space<vmem>>, vector<4x288xf32>,
    %c0_44 = arith.constant 0 : index
    %c0_45 = arith.constant 0 : index
    %70 = vector.load %arg2[%c0_44, %c0_45] : memref<8x36xf32, #tpu.memory_space<vmem>>, vector<8x36xf32>
    %c0_46 = arith.constant 0 : index
    %c0_47 = arith.constant 0 : index
    %71 = vector.load %arg6[%c0_46, %c0_47] : memref<36x288xf32, #tpu.memory_space<vmem>>, vector<36x288xf32>
    %cst_48 = arith.constant dense<0.000000e+00> : vector<8x288xf32>
    %72 = tpu.matmul %70, %71, %cst_48 {dimension_numbers = #tpu.dot_dimension_numbers<[1], [0], [0], [1], [0, 0, 1, 1], [], []>} : vector<8x36xf32>, vector<36x288xf32>, vector<8x288xf32> -> vector<8x288xf32>
    %c0_49 = arith.constant 0 : index
    %c0_50 = arith.constant 0 : index
    %73 = vector.load %arg3[%c0_49, %c0_50] : memref<8x1xf32, #tpu.memory_space<vmem>>, vector<8x1xf32>
    %74 = vector.broadcast %73 : vector<8x1xf32> to vector<8x288xf32>
    %75 = arith.addf %72, %74 : vector<8x288xf32>
    %cst_51 = arith.constant 0.000000e+00 : f32
    %76 = vector.broadcast %cst_51 : f32 to vector<8x288xf32>
    %77 = arith.maximumf %75, %76 : vector<8x288xf32>
    %78 = vector.extract_strided_slice %77 {offsets = [0, 0], sizes = [8, 16], strides = [1, 1]} : vector<8x288xf32> to vector<8x16xf32>
    %c0_52 = arith.constant 0 : index
    %c0_53 = arith.constant 0 : index
    %c0_54 = arith.constant 0 : index
    %79 = vector.load %arg4[%c0_52, %c0_53, %c0_54] : memref<1x8x256xf32, #tpu.memory_space<vmem>>, vector<1x8x16xf32>
    %80 = vector.shape_cast %79 : vector<1x8x16xf32> to vector<8x16xf32>
    %81 = vector.shape_cast %78 : vector<8x16xf32> to vector<1x8x16xf32>
    tpu.vector_store %arg4[%c0_52, %c0_53, %c0_54], %81 {strides = array<i32>} : memref<1x8x256xf32, #tpu.memory_space<vmem>>, vector<1x8x16xf32>,
    %82 = vector.extract_strided_slice %77 {offsets = [0, 18], sizes = [8, 16], strides = [1, 1]} : vector<8x288xf32> to vector<8x16xf32>
    %c0_55 = arith.constant 0 : index
    %c0_56 = arith.constant 0 : index
    %c16_57 = arith.constant 16 : index
    %83 = vector.load %arg4[%c0_55, %c0_56, %c16_57] : memref<1x8x256xf32, #tpu.memory_space<vmem>>, vector<1x8x16xf32>
    %84 = vector.shape_cast %83 : vector<1x8x16xf32> to vector<8x16xf32>
    %85 = vector.shape_cast %82 : vector<8x16xf32> to vector<1x8x16xf32>
    tpu.vector_store %arg4[%c0_55, %c0_56, %c16_57], %85 {strides = array<i32>} : memref<1x8x256xf32, #tpu.memory_space<vmem>>, vector<1x8x16xf32>,
    %86 = vector.extract_strided_slice %77 {offsets = [0, 36], sizes = [8, 16], strides = [1, 1]} : vector<8x288xf32> to vector<8x16xf32>
    %c0_58 = arith.constant 0 : index
    %c0_59 = arith.constant 0 : index
    %c32_60 = arith.constant 32 : index
    %87 = vector.load %arg4[%c0_58, %c0_59, %c32_60] : memref<1x8x256xf32, #tpu.memory_space<vmem>>, vector<1x8x16xf32>
    %88 = vector.shape_cast %87 : vector<1x8x16xf32> to vector<8x16xf32>
    %89 = vector.shape_cast %86 : vector<8x16xf32> to vector<1x8x16xf32>
    tpu.vector_store %arg4[%c0_58, %c0_59, %c32_60], %89 {strides = array<i32>} : memref<1x8x256xf32, #tpu.memory_space<vmem>>, vector<1x8x16xf32>,
    %90 = vector.extract_strided_slice %77 {offsets = [0, 54], sizes = [8, 16], strides = [1, 1]} : vector<8x288xf32> to vector<8x16xf32>
    %c0_61 = arith.constant 0 : index
    %c0_62 = arith.constant 0 : index
    %c48 = arith.constant 48 : index
    %91 = vector.load %arg4[%c0_61, %c0_62, %c48] : memref<1x8x256xf32, #tpu.memory_space<vmem>>, vector<1x8x16xf32>
    %92 = vector.shape_cast %91 : vector<1x8x16xf32> to vector<8x16xf32>
    %93 = vector.shape_cast %90 : vector<8x16xf32> to vector<1x8x16xf32>
    tpu.vector_store %arg4[%c0_61, %c0_62, %c48], %93 {strides = array<i32>} : memref<1x8x256xf32, #tpu.memory_space<vmem>>, vector<1x8x16xf32>,
    %94 = vector.extract_strided_slice %77 {offsets = [0, 72], sizes = [8, 16], strides = [1, 1]} : vector<8x288xf32> to vector<8x16xf32>
    %c0_63 = arith.constant 0 : index
    %c0_64 = arith.constant 0 : index
    %c64 = arith.constant 64 : index
    %95 = vector.load %arg4[%c0_63, %c0_64, %c64] : memref<1x8x256xf32, #tpu.memory_space<vmem>>, vector<1x8x16xf32>
    %96 = vector.shape_cast %95 : vector<1x8x16xf32> to vector<8x16xf32>
    %97 = vector.shape_cast %94 : vector<8x16xf32> to vector<1x8x16xf32>
    tpu.vector_store %arg4[%c0_63, %c0_64, %c64], %97 {strides = array<i32>} : memref<1x8x256xf32, #tpu.memory_space<vmem>>, vector<1x8x16xf32>,
    %98 = vector.extract_strided_slice %77 {offsets = [0, 90], sizes = [8, 16], strides = [1, 1]} : vector<8x288xf32> to vector<8x16xf32>
    %c0_65 = arith.constant 0 : index
    %c0_66 = arith.constant 0 : index
    %c80 = arith.constant 80 : index
    %99 = vector.load %arg4[%c0_65, %c0_66, %c80] : memref<1x8x256xf32, #tpu.memory_space<vmem>>, vector<1x8x16xf32>
    %100 = vector.shape_cast %99 : vector<1x8x16xf32> to vector<8x16xf32>
    %101 = vector.shape_cast %98 : vector<8x16xf32> to vector<1x8x16xf32>
    tpu.vector_store %arg4[%c0_65, %c0_66, %c80], %101 {strides = array<i32>} : memref<1x8x256xf32, #tpu.memory_space<vmem>>, vector<1x8x16xf32>,
    %102 = vector.extract_strided_slice %77 {offsets = [0, 108], sizes = [8, 16], strides = [1, 1]} : vector<8x288xf32> to vector<8x16xf32>
    %c0_67 = arith.constant 0 : index
    %c0_68 = arith.constant 0 : index
    %c96 = arith.constant 96 : index
    %103 = vector.load %arg4[%c0_67, %c0_68, %c96] : memref<1x8x256xf32, #tpu.memory_space<vmem>>, vector<1x8x16xf32>
    %104 = vector.shape_cast %103 : vector<1x8x16xf32> to vector<8x16xf32>
    %105 = vector.shape_cast %102 : vector<8x16xf32> to vector<1x8x16xf32>
    tpu.vector_store %arg4[%c0_67, %c0_68, %c96], %105 {strides = array<i32>} : memref<1x8x256xf32, #tpu.memory_space<vmem>>, vector<1x8x16xf32>,
    %106 = vector.extract_strided_slice %77 {offsets = [0, 126], sizes = [8, 16], strides = [1, 1]} : vector<8x288xf32> to vector<8x16xf32>
    %c0_69 = arith.constant 0 : index
    %c0_70 = arith.constant 0 : index
    %c112 = arith.constant 112 : index
    %107 = vector.load %arg4[%c0_69, %c0_70, %c112] : memref<1x8x256xf32, #tpu.memory_space<vmem>>, vector<1x8x16xf32>
    %108 = vector.shape_cast %107 : vector<1x8x16xf32> to vector<8x16xf32>
    %109 = vector.shape_cast %106 : vector<8x16xf32> to vector<1x8x16xf32>
    tpu.vector_store %arg4[%c0_69, %c0_70, %c112], %109 {strides = array<i32>} : memref<1x8x256xf32, #tpu.memory_space<vmem>>, vector<1x8x16xf32>,
    %110 = vector.extract_strided_slice %77 {offsets = [0, 144], sizes = [8, 16], strides = [1, 1]} : vector<8x288xf32> to vector<8x16xf32>
    %c0_71 = arith.constant 0 : index
    %c0_72 = arith.constant 0 : index
    %c128 = arith.constant 128 : index
    %111 = vector.load %arg4[%c0_71, %c0_72, %c128] : memref<1x8x256xf32, #tpu.memory_space<vmem>>, vector<1x8x16xf32>
    %112 = vector.shape_cast %111 : vector<1x8x16xf32> to vector<8x16xf32>
    %113 = vector.shape_cast %110 : vector<8x16xf32> to vector<1x8x16xf32>
    tpu.vector_store %arg4[%c0_71, %c0_72, %c128], %113 {strides = array<i32>} : memref<1x8x256xf32, #tpu.memory_space<vmem>>, vector<1x8x16xf32>,
    %114 = vector.extract_strided_slice %77 {offsets = [0, 162], sizes = [8, 16], strides = [1, 1]} : vector<8x288xf32> to vector<8x16xf32>
    %c0_73 = arith.constant 0 : index
    %c0_74 = arith.constant 0 : index
    %c144 = arith.constant 144 : index
    %115 = vector.load %arg4[%c0_73, %c0_74, %c144] : memref<1x8x256xf32, #tpu.memory_space<vmem>>, vector<1x8x16xf32>
    %116 = vector.shape_cast %115 : vector<1x8x16xf32> to vector<8x16xf32>
    %117 = vector.shape_cast %114 : vector<8x16xf32> to vector<1x8x16xf32>
    tpu.vector_store %arg4[%c0_73, %c0_74, %c144], %117 {strides = array<i32>} : memref<1x8x256xf32, #tpu.memory_space<vmem>>, vector<1x8x16xf32>,
    %118 = vector.extract_strided_slice %77 {offsets = [0, 180], sizes = [8, 16], strides = [1, 1]} : vector<8x288xf32> to vector<8x16xf32>
    %c0_75 = arith.constant 0 : index
    %c0_76 = arith.constant 0 : index
    %c160 = arith.constant 160 : index
    %119 = vector.load %arg4[%c0_75, %c0_76, %c160] : memref<1x8x256xf32, #tpu.memory_space<vmem>>, vector<1x8x16xf32>
    %120 = vector.shape_cast %119 : vector<1x8x16xf32> to vector<8x16xf32>
    %121 = vector.shape_cast %118 : vector<8x16xf32> to vector<1x8x16xf32>
    tpu.vector_store %arg4[%c0_75, %c0_76, %c160], %121 {strides = array<i32>} : memref<1x8x256xf32, #tpu.memory_space<vmem>>, vector<1x8x16xf32>,
    %122 = vector.extract_strided_slice %77 {offsets = [0, 198], sizes = [8, 16], strides = [1, 1]} : vector<8x288xf32> to vector<8x16xf32>
    %c0_77 = arith.constant 0 : index
    %c0_78 = arith.constant 0 : index
    %c176 = arith.constant 176 : index
    %123 = vector.load %arg4[%c0_77, %c0_78, %c176] : memref<1x8x256xf32, #tpu.memory_space<vmem>>, vector<1x8x16xf32>
    %124 = vector.shape_cast %123 : vector<1x8x16xf32> to vector<8x16xf32>
    %125 = vector.shape_cast %122 : vector<8x16xf32> to vector<1x8x16xf32>
    tpu.vector_store %arg4[%c0_77, %c0_78, %c176], %125 {strides = array<i32>} : memref<1x8x256xf32, #tpu.memory_space<vmem>>, vector<1x8x16xf32>,
    %126 = vector.extract_strided_slice %77 {offsets = [0, 216], sizes = [8, 16], strides = [1, 1]} : vector<8x288xf32> to vector<8x16xf32>
    %c0_79 = arith.constant 0 : index
    %c0_80 = arith.constant 0 : index
    %c192 = arith.constant 192 : index
    %127 = vector.load %arg4[%c0_79, %c0_80, %c192] : memref<1x8x256xf32, #tpu.memory_space<vmem>>, vector<1x8x16xf32>
    %128 = vector.shape_cast %127 : vector<1x8x16xf32> to vector<8x16xf32>
    %129 = vector.shape_cast %126 : vector<8x16xf32> to vector<1x8x16xf32>
    tpu.vector_store %arg4[%c0_79, %c0_80, %c192], %129 {strides = array<i32>} : memref<1x8x256xf32, #tpu.memory_space<vmem>>, vector<1x8x16xf32>,
    %130 = vector.extract_strided_slice %77 {offsets = [0, 234], sizes = [8, 16], strides = [1, 1]} : vector<8x288xf32> to vector<8x16xf32>
    %c0_81 = arith.constant 0 : index
    %c0_82 = arith.constant 0 : index
    %c208 = arith.constant 208 : index
    %131 = vector.load %arg4[%c0_81, %c0_82, %c208] : memref<1x8x256xf32, #tpu.memory_space<vmem>>, vector<1x8x16xf32>
    %132 = vector.shape_cast %131 : vector<1x8x16xf32> to vector<8x16xf32>
    %133 = vector.shape_cast %130 : vector<8x16xf32> to vector<1x8x16xf32>
    tpu.vector_store %arg4[%c0_81, %c0_82, %c208], %133 {strides = array<i32>} : memref<1x8x256xf32, #tpu.memory_space<vmem>>, vector<1x8x16xf32>,
    %134 = vector.extract_strided_slice %77 {offsets = [0, 252], sizes = [8, 16], strides = [1, 1]} : vector<8x288xf32> to vector<8x16xf32>
    %c0_83 = arith.constant 0 : index
    %c0_84 = arith.constant 0 : index
    %c224 = arith.constant 224 : index
    %135 = vector.load %arg4[%c0_83, %c0_84, %c224] : memref<1x8x256xf32, #tpu.memory_space<vmem>>, vector<1x8x16xf32>
    %136 = vector.shape_cast %135 : vector<1x8x16xf32> to vector<8x16xf32>
    %137 = vector.shape_cast %134 : vector<8x16xf32> to vector<1x8x16xf32>
    tpu.vector_store %arg4[%c0_83, %c0_84, %c224], %137 {strides = array<i32>} : memref<1x8x256xf32, #tpu.memory_space<vmem>>, vector<1x8x16xf32>,
    %138 = vector.extract_strided_slice %77 {offsets = [0, 270], sizes = [8, 16], strides = [1, 1]} : vector<8x288xf32> to vector<8x16xf32>
    %c0_85 = arith.constant 0 : index
    %c0_86 = arith.constant 0 : index
    %c240 = arith.constant 240 : index
    %139 = vector.load %arg4[%c0_85, %c0_86, %c240] : memref<1x8x256xf32, #tpu.memory_space<vmem>>, vector<1x8x16xf32>
    %140 = vector.shape_cast %139 : vector<1x8x16xf32> to vector<8x16xf32>
    %141 = vector.shape_cast %138 : vector<8x16xf32> to vector<1x8x16xf32>
    tpu.vector_store %arg4[%c0_85, %c0_86, %c240], %141 {strides = array<i32>} : memref<1x8x256xf32, #tpu.memory_space<vmem>>, vector<1x8x16xf32>,
    return
  }
  func.func @transform_0(%arg0: i32) -> (i32, i32, i32, i32) {
    %c0_i32 = arith.constant 0 : i32
    %c0_i32_0 = arith.constant 0 : i32
    %c0_i32_1 = arith.constant 0 : i32
    %c0_i32_2 = arith.constant 0 : i32
    return %arg0, %c0_i32, %c0_i32_0, %c0_i32_1 : i32, i32, i32, i32
  }
  func.func @transform_1(%arg0: i32) -> (i32, i32) {
    %c0_i32 = arith.constant 0 : i32
    %c0_i32_0 = arith.constant 0 : i32
    %c0_i32_1 = arith.constant 0 : i32
    return %c0_i32, %c0_i32_0 : i32, i32
  }
  func.func @transform_2(%arg0: i32) -> (i32, i32) {
    %c0_i32 = arith.constant 0 : i32
    %c0_i32_0 = arith.constant 0 : i32
    %c0_i32_1 = arith.constant 0 : i32
    return %c0_i32, %c0_i32_0 : i32, i32
  }
  func.func @transform_3(%arg0: i32) -> (i32, i32, i32) {
    %c0_i32 = arith.constant 0 : i32
    %c0_i32_0 = arith.constant 0 : i32
    %c0_i32_1 = arith.constant 0 : i32
    return %arg0, %c0_i32, %c0_i32_0 : i32, i32, i32
  }
}

</mosaic_0001>

<llo_original>
// kernel: conv_block_forward.1
$region0: #{conv_block_forward.1}
  #allocation0 [shape = 'u32[]', space=smem, size = 0x4, offset = 0x4, fixed_abs, tag = 'smem constant byte address 0x4 - core index']
  #allocation1 [shape = 'u32[72,128]{1,0:T(1,128)}', space=vmem, size = 0x9000, scoped, tag = 'internal scratch']
  #allocation2 [shape = 'f32[4,384]{1,0:T(4,128)}', space=vmem, size = 0x1800, scoped, tag = 'scratch operand']
  #allocation3 [shape = 'f32[36,288]{1,0:T(8,128)}', space=vmem, size = 0xf000, scoped, tag = 'scratch operand']
  %s0 = inlined_call_operand.vmem [shape: f32[2,4,16,16], index: 0, kind: input, shape index: {}]
  %s1 = inlined_call_operand.vmem [shape: f32[8,36], index: 1, kind: input, shape index: {}]
  %s2 = inlined_call_operand.vmem [shape: f32[8,1], index: 2, kind: input, shape index: {}]
  %s3 = inlined_call_operand.vmem [shape: f32[2,8,256], index: 3, kind: output, shape index: {}]
  %s4 = sld [smem:[#allocation0]]
  $region45: #{conv_block_forward.1} parent=0
    _
  %s6 = ssub.s32 1, %s4
  %s7 = scalar_select 0, %s6, %s4
  loop: start=0, step=1, limit=4
  $region2: #{conv_block_forward.1} parent=0 // loop_pre_header
    _
  $region3: #{conv_block_forward.1} parent=0 // loop_header
    %s9 = sphi 0, %s13
    %p10 = scmp.ge.s32.totalorder %s9, 4
    %s19 = sphi 0, %s21
    %s22 = sphi 0, %s19
    %s23 = sphi 0, %s22
    %s39 = sphi 0, %s23
    %s43 = sphi 0, %s43
    %s45 = sphi 0, %s43
    %s46 = sphi 0, %s45
    %s60 = sphi 0, %s46
    %s64 = sphi 0, %s64
    %s66 = sphi 0, %s64
    %s67 = sphi 0, %s66
    %s81 = sphi 0, %s67
    %s87 = sphi 0, %s89
    %s90 = sphi 0, %s87
    %s91 = sphi 0, %s90
    %s107 = sphi 0, %s91
  $region4: #{conv_block_forward.1} parent=0 // loop_header_branch
    %12 = sbr.rel (%p10) target = $region8
  $region5: #{conv_block_forward.1} parent=0 // loop_body
    %s14 = ssub.s32 %s9, 1
    %s15 = ssub.s32 %s9, 2
    %s16 = sadd.s32 %s9, 1
    %s17 = ssub.s32 %s9, %s16
    %p18 = scmp.eq.s32.totalorder %s17, 0
    %s20 = sadd.s32 %s19, 1
    %s21 = scalar_select %p18, %s19, %s20
    %p24 = pneg %p18
    %p25 = scmp.eq.s32.totalorder %s9, 1
    %p26 = por %p24, %p25
    %p27 = scmp.ne.s32.totalorder %s19, %s22
    %p28 = scmp.eq.s32.totalorder %s9, 0
    %p29 = por %p27, %p28
    %p30 = scmp.ne.s32.totalorder %s19, %s22
    %p31 = scmp.eq.s32.totalorder %s14, 1
    %p32 = por %p30, %p31
    %p33 = scmp.ne.s32.totalorder %s22, %s23
    %p34 = scmp.eq.s32.totalorder %s14, 0
    %p35 = por %p33, %p34
    %p36 = scmp.ne.s32.totalorder %s22, %s23
    %p37 = scmp.eq.s32.totalorder %s15, 1
    %p38 = por %p36, %p37
    %p40 = scmp.ne.s32.totalorder %s23, %s39
    %p41 = scmp.eq.s32.totalorder %s15, 0
    %p42 = por %p40, %p41
    %s44 = sadd.s32 %s43, 1
    %p47 = scmp.eq.s32.totalorder %s9, 1
    %p48 = scmp.ne.s32.totalorder %s43, %s45
    %p49 = scmp.eq.s32.totalorder %s9, 0
    %p50 = por %p48, %p49
    %p51 = scmp.ne.s32.totalorder %s43, %s45
    %p52 = scmp.eq.s32.totalorder %s14, 1
    %p53 = por %p51, %p52
    %p54 = scmp.ne.s32.totalorder %s45, %s46
    %p55 = scmp.eq.s32.totalorder %s14, 0
    %p56 = por %p54, %p55
    %p57 = scmp.ne.s32.totalorder %s45, %s46
    %p58 = scmp.eq.s32.totalorder %s15, 1
    %p59 = por %p57, %p58
    %p61 = scmp.ne.s32.totalorder %s46, %s60
    %p62 = scmp.eq.s32.totalorder %s15, 0
    %p63 = por %p61, %p62
    %s65 = sadd.s32 %s64, 1
    %p68 = scmp.eq.s32.totalorder %s9, 1
    %p69 = scmp.ne.s32.totalorder %s64, %s66
    %p70 = scmp.eq.s32.totalorder %s9, 0
    %p71 = por %p69, %p70
    %p72 = scmp.ne.s32.totalorder %s64, %s66
    %p73 = scmp.eq.s32.totalorder %s14, 1
    %p74 = por %p72, %p73
    %p75 = scmp.ne.s32.totalorder %s66, %s67
    %p76 = scmp.eq.s32.totalorder %s14, 0
    %p77 = por %p75, %p76
    %p78 = scmp.ne.s32.totalorder %s66, %s67
    %p79 = scmp.eq.s32.totalorder %s15, 1
    %p80 = por %p78, %p79
    %p82 = scmp.ne.s32.totalorder %s67, %s81
    %p83 = scmp.eq.s32.totalorder %s15, 0
    %p84 = por %p82, %p83
    %s85 = ssub.s32 %s9, %s16
    %p86 = scmp.eq.s32.totalorder %s85, 0
    %s88 = sadd.s32 %s87, 1
    %s89 = scalar_select %p86, %s87, %s88
    %p92 = pneg %p86
    %p93 = scmp.eq.s32.totalorder %s9, 1
    %p94 = por %p92, %p93
    %p95 = scmp.ne.s32.totalorder %s87, %s90
    %p96 = scmp.eq.s32.totalorder %s9, 0
    %p97 = por %p95, %p96
    %p98 = scmp.ne.s32.totalorder %s87, %s90
    %p99 = scmp.eq.s32.totalorder %s14, 1
    %p100 = por %p98, %p99
    %p101 = scmp.ne.s32.totalorder %s90, %s91
    %p102 = scmp.eq.s32.totalorder %s14, 0
    %p103 = por %p101, %p102
    %p104 = scmp.ne.s32.totalorder %s90, %s91
    %p105 = scmp.eq.s32.totalorder %s15, 1
    %p106 = por %p104, %p105
    %p108 = scmp.ne.s32.totalorder %s91, %s107
    %p109 = scmp.eq.s32.totalorder %s15, 0
    %p110 = por %p108, %p109
    %p111 = scmp.le.s32.totalorder 1, %s9
    %p112 = scmp.lt.s32.totalorder %s9, 3
    %p113 = pnand %p111, %p112
    %p114 = pneg %p113
    // Predicated region
    $region9: #{conv_block_forward.1} parent=5 // pred_check
      _
    $region10: #{conv_block_forward.1} parent=5 // pred_check_branch
      %116 = sbr.rel (%p113) target = $region12
    $region11: #{conv_block_forward.1} parent=5 // pred_region
      %s117 = ssub.s32 %s9, 1
      // Predicated region
      $region13: #{conv_block_forward.1} parent=11 // pred_check
        %p118 = pneg %p56
      $region14: #{conv_block_forward.1} parent=11 // pred_check_branch
        %120 = sbr.rel (%p118) target = $region16
      $region15: #{conv_block_forward.1} parent=11 // pred_region
        _
      $region16: #{conv_block_forward.1} parent=11 // pred_fallthru
        _
      // Predicated region
      $region17: #{conv_block_forward.1} parent=11 // pred_check
        %p121 = pneg %p77
      $region18: #{conv_block_forward.1} parent=11 // pred_check_branch
        %123 = sbr.rel (%p121) target = $region20
      $region19: #{conv_block_forward.1} parent=11 // pred_region
        _
      $region20: #{conv_block_forward.1} parent=11 // pred_fallthru
        _
    $region12: #{conv_block_forward.1} parent=5 // pred_fallthru
      _
    %p124 = scmp.lt.s32.totalorder %s9, 2
    // Predicated region
    $region21: #{conv_block_forward.1} parent=5 // pred_check
      %p125 = pneg %p124
    $region22: #{conv_block_forward.1} parent=5 // pred_check_branch
      %127 = sbr.rel (%p125) target = $region24
    $region23: #{conv_block_forward.1} parent=5 // pred_region
      // Predicated region
      $region25: #{conv_block_forward.1} parent=23 // pred_check
        %p128 = pneg %p29
      $region26: #{conv_block_forward.1} parent=23 // pred_check_branch
        %130 = sbr.rel (%p128) target = $region28
      $region27: #{conv_block_forward.1} parent=23 // pred_region
        %p131 = scmp.lt.s32.totalorder %s9, 1
        %s132 = scalar_select %p131, %s9, 1
        %s133 = smul.addr %s132, 8
        %s134 = smul.addr %s133, 8
        %s135 = scalar_lea.vmem %s0, %s134
      $region28: #{conv_block_forward.1} parent=23 // pred_fallthru
        _
    $region24: #{conv_block_forward.1} parent=5 // pred_fallthru
      _
    %p136 = scmp.le.s32.totalorder 1, %s9
    %p137 = scmp.lt.s32.totalorder %s9, 3
    %p138 = pnand %p136, %p137
    %p139 = pneg %p138
    // Predicated region
    $region29: #{conv_block_forward.1} parent=5 // pred_check
      _
    $region30: #{conv_block_forward.1} parent=5 // pred_check_branch
      %141 = sbr.rel (%p138) target = $region32
    $region31: #{conv_block_forward.1} parent=5 // pred_region
      %s142 = ssub.s32 %s9, 1
      %p143 = scmp.lt.s32.totalorder %s14, 1
      %s144 = scalar_select %p143, %s14, 1
      %s145 = smul.addr %s144, 8
      %s146 = smul.addr %s145, 8
      %s147 = scalar_lea.vmem %s0, %s146
      %p148 = pneg %p35
      %p149 = pneg %p32
      %p150 = pneg %p56
      %p151 = pneg %p53
      %p152 = pneg %p77
      %p153 = pneg %p74
      %p154 = pneg %p103
      %p155 = pneg %p100
      %p156 = scmp.lt.s32.totalorder %s14, 1
      %s157 = scalar_select %p156, %s14, 1
      %s158 = smul.addr %s157, 2
      %s159 = smul.addr %s158, 8
      %s160 = scalar_lea.vmem %s3, %s159
      %p161 = scmp.lt.s32.totalorder %s14, 1
      %s162 = scalar_select %p161, %s14, 1
      %s163 = smul.addr %s162, 8
      %s164 = smul.addr %s163, 8
      %s165 = scalar_lea.vmem %s0, %s164
      %p166 = scmp.lt.s32.totalorder %s14, 1
      %s167 = scalar_select %p166, %s14, 1
      %s168 = smul.addr %s167, 2
      %s169 = smul.addr %s168, 8
      %s170 = scalar_lea.vmem %s3, %s169
      %171 = vst [vmem:[#allocation2] sm:$0xff] 0.0
      %172 = vst [vmem:[#allocation2 + $0x8] sm:$0xf] 0.0
      %v173 = vld [vmem:[%s165] sm:$0xff]
      %v174 = vld [vmem:[%s165 + $0x8] sm:$0xff]
      %v175 = vld [vmem:[%s165 + $0x10] sm:$0xff]
      %v176 = vld [vmem:[%s165 + $0x18] sm:$0xff]
      %v177 = vld [vmem:[%s165 + $0x20] sm:$0xff]
      %v178 = vld [vmem:[%s165 + $0x28] sm:$0xff]
      %v179 = vld [vmem:[%s165 + $0x30] sm:$0xff]
      %v180 = vld [vmem:[%s165 + $0x38] sm:$0xff]
      %v185 = vrot.slane %v175, 7
      %vm186 = vcmask 1041409
      %v187 = vsel %vm186, %v185, %v173
      %vm188 = vcmask 1045509
      %v189 = vsel %vm188, %v185, %v187
      %v190 = vrot.slane %v177, 6
      %vm191 = vcmask 1042434
      %v192 = vsel %vm191, %v190, %v189
      %vm193 = vcmask 1046534
      %v194 = vsel %vm193, %v190, %v192
      %v195 = vrot.slane %v179, 5
      %vm196 = vcmask 1043459
      %v197 = vsel %vm196, %v195, %v194
      %vm198 = vcmask 1047559
      %v199 = vsel %vm198, %v195, %v197
      %200 = vrot.lane.b32.xlu0 %v199, 19
      %v201 = vpop.permute.xlu0 %200
      %vm203 = vcmask 281752
      %204 = vst.msk [vmem:[#allocation2] sm:$0xf] %vm203, %v201
      %v205 = vrot.slane %v173, 1
      %v206 = vsel %vm186, %v175, %v205
      %v207 = vsel %vm188, %v175, %v206
      %v208 = vrot.slane %v177, 7
      %v209 = vsel %vm191, %v208, %v207
      %v210 = vsel %vm193, %v208, %v209
      %v211 = vrot.slane %v179, 6
      %v212 = vsel %vm196, %v211, %v210
      %v213 = vsel %vm198, %v211, %v212
      %214 = vrot.lane.b32.xlu0 %v213, 37
      %v215 = vpop.permute.xlu0 %214
      %vm217 = vcmask 429352
      %218 = vst.msk [vmem:[#allocation2] sm:$0xf] %vm217, %v215
      %v219 = vrot.slane %v173, 2
      %v220 = vrot.slane %v175, 1
      %v221 = vsel %vm186, %v220, %v219
      %v222 = vsel %vm188, %v220, %v221
      %v223 = vsel %vm191, %v177, %v222
      %v224 = vsel %vm193, %v177, %v223
      %v225 = vrot.slane %v179, 7
      %v226 = vsel %vm196, %v225, %v224
      %v227 = vsel %vm198, %v225, %v226
      %228 = vrot.lane.b32.xlu0 %v227, 55
      %v229 = vpop.permute.xlu0 %228
      %vm231 = vcmask 576952
      %232 = vst.msk [vmem:[#allocation2] sm:$0xf] %vm231, %v229
      %v233 = vrot.slane %v173, 3
      %v234 = vrot.slane %v175, 2
      %v235 = vsel %vm186, %v234, %v233
      %v236 = vsel %vm188, %v234, %v235
      %v237 = vrot.slane %v177, 1
      %v238 = vsel %vm191, %v237, %v236
      %v239 = vsel %vm193, %v237, %v238
      %v240 = vsel %vm196, %v179, %v239
      %v241 = vsel %vm198, %v179, %v240
      %242 = vrot.lane.b32.xlu0 %v241, 73
      %v243 = vpop.permute.xlu0 %242
      %vm245 = vcmask 724552
      %246 = vst.msk [vmem:[#allocation2] sm:$0xf] %vm245, %v243
      %247 = vst.sshfl [vmem:[#allocation1] sm:$0xff pattern:$0x75316420] %v173
      %s248 = scalar_lea.vmem [#allocation1], 1
      %v249 = vld [vmem:[%s248] ss:$2 sm:$0xff]
      %250 = vst.sshfl [vmem:[#allocation1 + $0x10] sm:$0xff pattern:$0x75316420] %v175
      %s251 = scalar_lea.vmem [#allocation1], 17
      %v252 = vld [vmem:[%s251] ss:$2 sm:$0xff]
      %253 = vst.sshfl [vmem:[#allocation1 + $0x20] sm:$0xff pattern:$0x75316420] %v177
      %s254 = scalar_lea.vmem [#allocation1], 33
      %v255 = vld [vmem:[%s254] ss:$2 sm:$0xff]
      %256 = vst.sshfl [vmem:[#allocation1 + $0x30] sm:$0xff pattern:$0x75316420] %v179
      %s257 = scalar_lea.vmem [#allocation1], 49
      %v258 = vld [vmem:[%s257] ss:$2 sm:$0xff]
      %v259 = vrot.slane %v252, 7
      %v260 = vsel %vm186, %v259, %v249
      %v261 = vsel %vm188, %v259, %v260
      %v262 = vrot.slane %v255, 6
      %v263 = vsel %vm191, %v262, %v261
      %v264 = vsel %vm193, %v262, %v263
      %v265 = vrot.slane %v258, 5
      %v266 = vsel %vm196, %v265, %v264
      %v267 = vsel %vm198, %v265, %v266
      %268 = vrot.lane.b32.xlu0 %v267, 91
      %v269 = vpop.permute.xlu0 %268
      %vm271 = vcmask 872152
      %272 = vst.msk [vmem:[#allocation2] sm:$0xf] %vm271, %v269
      %273 = vst.sshfl [vmem:[#allocation1] sm:$0xff pattern:$0x75316420] %v173
      %s274 = scalar_lea.vmem [#allocation1], 1
      %v275 = vld [vmem:[%s274] ss:$2 sm:$0xff]
      %276 = vst.sshfl [vmem:[#allocation1 + $0x10] sm:$0xff pattern:$0x75316420] %v175
      %s277 = scalar_lea.vmem [#allocation1], 17
      %v278 = vld [vmem:[%s277] ss:$2 sm:$0xff]
      %279 = vst.sshfl [vmem:[#allocation1 + $0x20] sm:$0xff pattern:$0x75316420] %v177
      %s280 = scalar_lea.vmem [#allocation1], 33
      %v281 = vld [vmem:[%s280] ss:$2 sm:$0xff]
      %282 = vst.sshfl [vmem:[#allocation1 + $0x30] sm:$0xff pattern:$0x75316420] %v179
      %s283 = scalar_lea.vmem [#allocation1], 49
      %v284 = vld [vmem:[%s283] ss:$2 sm:$0xff]
      %v285 = vrot.slane %v275, 1
      %v286 = vsel %vm186, %v278, %v285
      %v287 = vsel %vm188, %v278, %v286
      %v288 = vrot.slane %v281, 7
      %v289 = vsel %vm191, %v288, %v287
      %v290 = vsel %vm193, %v288, %v289
      %v291 = vrot.slane %v284, 6
      %v292 = vsel %vm196, %v291, %v290
      %v293 = vsel %vm198, %v291, %v292
      %294 = vrot.lane.b32.xlu0 %v293, 109
      %v295 = vpop.permute.xlu0 %294
      %vm297 = vcmask 1019752
      %298 = vst.msk [vmem:[#allocation2] sm:$0xf] %vm297, %v295
      %299 = vst.sshfl [vmem:[#allocation1] sm:$0xff pattern:$0x75316420] %v173
      %s300 = scalar_lea.vmem [#allocation1], 1
      %v301 = vld [vmem:[%s300] ss:$2 sm:$0xff]
      %302 = vst.sshfl [vmem:[#allocation1 + $0x10] sm:$0xff pattern:$0x75316420] %v175
      %s303 = scalar_lea.vmem [#allocation1], 17
      %v304 = vld [vmem:[%s303] ss:$2 sm:$0xff]
      %305 = vst.sshfl [vmem:[#allocation1 + $0x20] sm:$0xff pattern:$0x75316420] %v177
      %s306 = scalar_lea.vmem [#allocation1], 33
      %v307 = vld [vmem:[%s306] ss:$2 sm:$0xff]
      %308 = vst.sshfl [vmem:[#allocation1 + $0x30] sm:$0xff pattern:$0x75316420] %v179
      %s309 = scalar_lea.vmem [#allocation1], 49
      %v310 = vld [vmem:[%s309] ss:$2 sm:$0xff]
      %v311 = vrot.slane %v301, 2
      %v312 = vrot.slane %v304, 1
      %v313 = vsel %vm186, %v312, %v311
      %v314 = vsel %vm188, %v312, %v313
      %v315 = vsel %vm191, %v307, %v314
      %v316 = vsel %vm193, %v307, %v315
      %v317 = vrot.slane %v310, 7
      %v318 = vsel %vm196, %v317, %v316
      %v319 = vsel %vm198, %v317, %v318
      %320 = vrot.lane.b32.xlu0 %v319, 127
      %v321 = vpop.permute.xlu0 %320
      %v322 = vrot.slane %v321, 4
      %vm323 = vcmask 1039360
      %v324 = vsel %vm323, %v322, %v321
      %vm326 = vcmask 1044472
      %vm327 = vcmask 121860
      %vm328 = vmor %vm327, %vm326
      %329 = vst.msk [vmem:[#allocation2] sm:$0xff] %vm328, %v324
      %330 = vst.sshfl [vmem:[#allocation1] sm:$0xff pattern:$0x75316420] %v173
      %s331 = scalar_lea.vmem [#allocation1], 1
      %v332 = vld [vmem:[%s331] ss:$2 sm:$0xff]
      %333 = vst.sshfl [vmem:[#allocation1 + $0x10] sm:$0xff pattern:$0x75316420] %v175
      %s334 = scalar_lea.vmem [#allocation1], 17
      %v335 = vld [vmem:[%s334] ss:$2 sm:$0xff]
      %336 = vst.sshfl [vmem:[#allocation1 + $0x20] sm:$0xff pattern:$0x75316420] %v177
      %s337 = scalar_lea.vmem [#allocation1], 33
      %v338 = vld [vmem:[%s337] ss:$2 sm:$0xff]
      %339 = vst.sshfl [vmem:[#allocation1 + $0x30] sm:$0xff pattern:$0x75316420] %v179
      %s340 = scalar_lea.vmem [#allocation1], 49
      %v341 = vld [vmem:[%s340] ss:$2 sm:$0xff]
      %v342 = vrot.slane %v332, 3
      %v343 = vrot.slane %v335, 2
      %v344 = vsel %vm186, %v343, %v342
      %v345 = vsel %vm188, %v343, %v344
      %v346 = vrot.slane %v338, 1
      %v347 = vsel %vm191, %v346, %v345
      %v348 = vsel %vm193, %v346, %v347
      %v349 = vsel %vm196, %v341, %v348
      %v350 = vsel %vm198, %v341, %v349
      %351 = vrot.lane.b32.xlu0 %v350, 17
      %v352 = vpop.permute.xlu0 %351
      %vm354 = vcmask 265352
      %355 = vst.msk [vmem:[#allocation2 + $0x4] sm:$0xf] %vm354, %v352
      %v360 = vrot.slane %v176, 7
      %v361 = vsel %vm186, %v360, %v174
      %v362 = vsel %vm188, %v360, %v361
      %v363 = vrot.slane %v178, 6
      %v364 = vsel %vm191, %v363, %v362
      %v365 = vsel %vm193, %v363, %v364
      %v366 = vrot.slane %v180, 5
      %v367 = vsel %vm196, %v366, %v365
      %v368 = vsel %vm198, %v366, %v367
      %369 = vrot.lane.b32.xlu0 %v368, 35
      %v370 = vpop.permute.xlu0 %369
      %vm372 = vcmask 412952
      %373 = vst.msk [vmem:[#allocation2 + $0x4] sm:$0xf] %vm372, %v370
      %v374 = vrot.slane %v174, 1
      %v375 = vsel %vm186, %v176, %v374
      %v376 = vsel %vm188, %v176, %v375
      %v377 = vrot.slane %v178, 7
      %v378 = vsel %vm191, %v377, %v376
      %v379 = vsel %vm193, %v377, %v378
      %v380 = vrot.slane %v180, 6
      %v381 = vsel %vm196, %v380, %v379
      %v382 = vsel %vm198, %v380, %v381
      %383 = vrot.lane.b32.xlu0 %v382, 53
      %v384 = vpop.permute.xlu0 %383
      %vm386 = vcmask 560552
      %387 = vst.msk [vmem:[#allocation2 + $0x4] sm:$0xf] %vm386, %v384
      %v388 = vrot.slane %v174, 2
      %v389 = vrot.slane %v176, 1
      %v390 = vsel %vm186, %v389, %v388
      %v391 = vsel %vm188, %v389, %v390
      %v392 = vsel %vm191, %v178, %v391
      %v393 = vsel %vm193, %v178, %v392
      %v394 = vrot.slane %v180, 7
      %v395 = vsel %vm196, %v394, %v393
      %v396 = vsel %vm198, %v394, %v395
      %397 = vrot.lane.b32.xlu0 %v396, 71
      %v398 = vpop.permute.xlu0 %397
      %vm400 = vcmask 708152
      %401 = vst.msk [vmem:[#allocation2 + $0x4] sm:$0xf] %vm400, %v398
      %v402 = vrot.slane %v174, 3
      %v403 = vrot.slane %v176, 2
      %v404 = vsel %vm186, %v403, %v402
      %v405 = vsel %vm188, %v403, %v404
      %v406 = vrot.slane %v178, 1
      %v407 = vsel %vm191, %v406, %v405
      %v408 = vsel %vm193, %v406, %v407
      %v409 = vsel %vm196, %v180, %v408
      %v410 = vsel %vm198, %v180, %v409
      %411 = vrot.lane.b32.xlu0 %v410, 89
      %v412 = vpop.permute.xlu0 %411
      %vm414 = vcmask 855752
      %415 = vst.msk [vmem:[#allocation2 + $0x4] sm:$0xf] %vm414, %v412
      %416 = vst.sshfl [vmem:[#allocation1] sm:$0xff pattern:$0x75316420] %v174
      %s417 = scalar_lea.vmem [#allocation1], 1
      %v418 = vld [vmem:[%s417] ss:$2 sm:$0xff]
      %419 = vst.sshfl [vmem:[#allocation1 + $0x10] sm:$0xff pattern:$0x75316420] %v176
      %s420 = scalar_lea.vmem [#allocation1], 17
      %v421 = vld [vmem:[%s420] ss:$2 sm:$0xff]
      %422 = vst.sshfl [vmem:[#allocation1 + $0x20] sm:$0xff pattern:$0x75316420] %v178
      %s423 = scalar_lea.vmem [#allocation1], 33
      %v424 = vld [vmem:[%s423] ss:$2 sm:$0xff]
      %425 = vst.sshfl [vmem:[#allocation1 + $0x30] sm:$0xff pattern:$0x75316420] %v180
      %s426 = scalar_lea.vmem [#allocation1], 49
      %v427 = vld [vmem:[%s426] ss:$2 sm:$0xff]
      %v428 = vrot.slane %v421, 7
      %v429 = vsel %vm186, %v428, %v418
      %v430 = vsel %vm188, %v428, %v429
      %v431 = vrot.slane %v424, 6
      %v432 = vsel %vm191, %v431, %v430
      %v433 = vsel %vm193, %v431, %v432
      %v434 = vrot.slane %v427, 5
      %v435 = vsel %vm196, %v434, %v433
      %v436 = vsel %vm198, %v434, %v435
      %437 = vrot.lane.b32.xlu0 %v436, 107
      %v438 = vpop.permute.xlu0 %437
      %vm440 = vcmask 1003352
      %441 = vst.msk [vmem:[#allocation2 + $0x4] sm:$0xf] %vm440, %v438
      %442 = vst.sshfl [vmem:[#allocation1] sm:$0xff pattern:$0x75316420] %v174
      %s443 = scalar_lea.vmem [#allocation1], 1
      %v444 = vld [vmem:[%s443] ss:$2 sm:$0xff]
      %445 = vst.sshfl [vmem:[#allocation1 + $0x10] sm:$0xff pattern:$0x75316420] %v176
      %s446 = scalar_lea.vmem [#allocation1], 17
      %v447 = vld [vmem:[%s446] ss:$2 sm:$0xff]
      %448 = vst.sshfl [vmem:[#allocation1 + $0x20] sm:$0xff pattern:$0x75316420] %v178
      %s449 = scalar_lea.vmem [#allocation1], 33
      %v450 = vld [vmem:[%s449] ss:$2 sm:$0xff]
      %451 = vst.sshfl [vmem:[#allocation1 + $0x30] sm:$0xff pattern:$0x75316420] %v180
      %s452 = scalar_lea.vmem [#allocation1], 49
      %v453 = vld [vmem:[%s452] ss:$2 sm:$0xff]
      %v454 = vrot.slane %v444, 1
      %v455 = vsel %vm186, %v447, %v454
      %v456 = vsel %vm188, %v447, %v455
      %v457 = vrot.slane %v450, 7
      %v458 = vsel %vm191, %v457, %v456
      %v459 = vsel %vm193, %v457, %v458
      %v460 = vrot.slane %v453, 6
      %v461 = vsel %vm196, %v460, %v459
      %v462 = vsel %vm198, %v460, %v461
      %463 = vrot.lane.b32.xlu0 %v462, 125
      %v464 = vpop.permute.xlu0 %463
      %v465 = vrot.slane %v464, 4
      %vm466 = vcmask 1022976
      %v467 = vsel %vm466, %v465, %v464
      %vm469 = vcmask 1044456
      %vm470 = vcmask 105476
      %vm471 = vmor %vm470, %vm469
      %472 = vst.msk [vmem:[#allocation2 + $0x4] sm:$0xff] %vm471, %v467
      %473 = vst.sshfl [vmem:[#allocation1] sm:$0xff pattern:$0x75316420] %v174
      %s474 = scalar_lea.vmem [#allocation1], 1
      %v475 = vld [vmem:[%s474] ss:$2 sm:$0xff]
      %476 = vst.sshfl [vmem:[#allocation1 + $0x10] sm:$0xff pattern:$0x75316420] %v176
      %s477 = scalar_lea.vmem [#allocation1], 17
      %v478 = vld [vmem:[%s477] ss:$2 sm:$0xff]
      %479 = vst.sshfl [vmem:[#allocation1 + $0x20] sm:$0xff pattern:$0x75316420] %v178
      %s480 = scalar_lea.vmem [#allocation1], 33
      %v481 = vld [vmem:[%s480] ss:$2 sm:$0xff]
      %482 = vst.sshfl [vmem:[#allocation1 + $0x30] sm:$0xff pattern:$0x75316420] %v180
      %s483 = scalar_lea.vmem [#allocation1], 49
      %v484 = vld [vmem:[%s483] ss:$2 sm:$0xff]
      %v485 = vrot.slane %v475, 2
      %v486 = vrot.slane %v478, 1
      %v487 = vsel %vm186, %v486, %v485
      %v488 = vsel %vm188, %v486, %v487
      %v489 = vsel %vm191, %v481, %v488
      %v490 = vsel %vm193, %v481, %v489
      %v491 = vrot.slane %v484, 7
      %v492 = vsel %vm196, %v491, %v490
      %v493 = vsel %vm198, %v491, %v492
      %494 = vrot.lane.b32.xlu0 %v493, 15
      %v495 = vpop.permute.xlu0 %494
      %vm497 = vcmask 248952
      %498 = vst.msk [vmem:[#allocation2 + $0x8] sm:$0xf] %vm497, %v495
      %499 = vst.sshfl [vmem:[#allocation1] sm:$0xff pattern:$0x75316420] %v174
      %s500 = scalar_lea.vmem [#allocation1], 1
      %v501 = vld [vmem:[%s500] ss:$2 sm:$0xff]
      %502 = vst.sshfl [vmem:[#allocation1 + $0x10] sm:$0xff pattern:$0x75316420] %v176
      %s503 = scalar_lea.vmem [#allocation1], 17
      %v504 = vld [vmem:[%s503] ss:$2 sm:$0xff]
      %505 = vst.sshfl [vmem:[#allocation1 + $0x20] sm:$0xff pattern:$0x75316420] %v178
      %s506 = scalar_lea.vmem [#allocation1], 33
      %v507 = vld [vmem:[%s506] ss:$2 sm:$0xff]
      %508 = vst.sshfl [vmem:[#allocation1 + $0x30] sm:$0xff pattern:$0x75316420] %v180
      %s509 = scalar_lea.vmem [#allocation1], 49
      %v510 = vld [vmem:[%s509] ss:$2 sm:$0xff]
      %v511 = vrot.slane %v501, 3
      %v512 = vrot.slane %v504, 2
      %v513 = vsel %vm186, %v512, %v511
      %v514 = vsel %vm188, %v512, %v513
      %v515 = vrot.slane %v507, 1
      %v516 = vsel %vm191, %v515, %v514
      %v517 = vsel %vm193, %v515, %v516
      %v518 = vsel %vm196, %v510, %v517
      %v519 = vsel %vm198, %v510, %v518
      %520 = vrot.lane.b32.xlu0 %v519, 33
      %v521 = vpop.permute.xlu0 %520
      %vm523 = vcmask 396552
      %524 = vst.msk [vmem:[#allocation2 + $0x8] sm:$0xf] %vm523, %v521
      %v525 = vld [vmem:[#allocation2] sm:$0xff]
      %v526 = vld [vmem:[#allocation2 + $0x8] sm:$0xf]
      %529 = vst [vmem:[#allocation1] ss:$2 sm:$0xff] %v525
      %s530 = scalar_lea.vmem [#allocation1], 16
      %531 = vst [vmem:[%s530] ss:$2 sm:$0xff] %v526
      %v532 = vld.sshfl [vmem:[#allocation1] sm:$0xff pattern:$0x75316420]
      %v533 = vld.sshfl [vmem:[#allocation1 + $0x8] sm:$0xff pattern:$0x75316420]
      %v534 = vld.sshfl [vmem:[#allocation1 + $0x10] sm:$0xff pattern:$0x75316420]
      %538 = vst [vmem:[#allocation3] sm:$0xf] %v532
      %539 = vst [vmem:[#allocation3 + $0x8] sm:$0xf] %v533
      %vm540 = vcmask 257024
      %541 = vst.msk [vmem:[#allocation3 + $0x10] sm:$0xf] %vm540, %v534
      %v542 = vld [vmem:[#allocation2] sm:$0xff]
      %v543 = vld [vmem:[#allocation2 + $0x8] sm:$0xf]
      %s546 = scalar_lea.vmem [#allocation1], 1
      %547 = vst [vmem:[%s546] ss:$2 sm:$0xff] %v542
      %s548 = scalar_lea.vmem [#allocation1], 17
      %549 = vst [vmem:[%s548] ss:$2 sm:$0xff] %v543
      %v550 = vld.sshfl [vmem:[#allocation1] sm:$0xff pattern:$0x75316420]
      %v551 = vld.sshfl [vmem:[#allocation1 + $0x8] sm:$0xff pattern:$0x75316420]
      %v552 = vld.sshfl [vmem:[#allocation1 + $0x10] sm:$0xff pattern:$0x75316420]
      %553 = vrot.lane.b32.xlu0 %v550, 127
      %v554 = vpop.permute.xlu0 %553
      %555 = vrot.lane.b32.xlu0 %v551, 127
      %v556 = vpop.permute.xlu0 %555
      %557 = vrot.lane.b32.xlu0 %v552, 127
      %v558 = vpop.permute.xlu0 %557
      %v559 = vsel %vm323, %v554, %v556
      %v560 = vsel %vm323, %v556, %v558
      %564 = vst [vmem:[#allocation3] sm:$0xf0] %v559
      %565 = vst [vmem:[#allocation3 + $0x8] sm:$0xf0] %v560
      %vm566 = vcmask 261124
      %567 = vst.msk [vmem:[#allocation3 + $0x10] sm:$0xf0] %vm566, %v558
      %v568 = vld [vmem:[#allocation2] sm:$0xff]
      %v569 = vld [vmem:[#allocation2 + $0x8] sm:$0xf]
      %572 = vst [vmem:[#allocation1] ss:$2 sm:$0xff] %v568
      %s573 = scalar_lea.vmem [#allocation1], 16
      %574 = vst [vmem:[%s573] ss:$2 sm:$0xff] %v569
      %v575 = vld.sshfl [vmem:[#allocation1] sm:$0xff pattern:$0x75316420]
      %v576 = vld.sshfl [vmem:[#allocation1 + $0x8] sm:$0xff pattern:$0x75316420]
      %v577 = vld.sshfl [vmem:[#allocation1 + $0x10] sm:$0xff pattern:$0x75316420]
      %578 = vrot.lane.b32.xlu0 %v575, 126
      %v579 = vpop.permute.xlu0 %578
      %580 = vrot.lane.b32.xlu0 %v576, 126
      %v581 = vpop.permute.xlu0 %580
      %582 = vrot.lane.b32.xlu0 %v577, 126
      %v583 = vpop.permute.xlu0 %582
      %vm584 = vcmask 1031168
      %v585 = vsel %vm584, %v579, %v581
      %v586 = vsel %vm584, %v581, %v583
      %590 = vst [vmem:[#allocation3 + $0x18] sm:$0xf] %v585
      %591 = vst [vmem:[#allocation3 + $0x20] sm:$0xf] %v586
      %592 = vst.msk [vmem:[#allocation3 + $0x28] sm:$0xf] %vm540, %v583
      %v593 = vld [vmem:[#allocation2] sm:$0xff]
      %v594 = vld [vmem:[#allocation2 + $0x8] sm:$0xf]
      %s597 = scalar_lea.vmem [#allocation1], 1
      %598 = vst [vmem:[%s597] ss:$2 sm:$0xff] %v593
      %s599 = scalar_lea.vmem [#allocation1], 17
      %600 = vst [vmem:[%s599] ss:$2 sm:$0xff] %v594
      %v601 = vld.sshfl [vmem:[#allocation1] sm:$0xff pattern:$0x75316420]
      %v602 = vld.sshfl [vmem:[#allocation1 + $0x8] sm:$0xff pattern:$0x75316420]
      %v603 = vld.sshfl [vmem:[#allocation1 + $0x10] sm:$0xff pattern:$0x75316420]
      %604 = vrot.lane.b32.xlu0 %v601, 110
      %v605 = vpop.permute.xlu0 %604
      %606 = vrot.lane.b32.xlu0 %v602, 110
      %v607 = vpop.permute.xlu0 %606
      %608 = vrot.lane.b32.xlu0 %v603, 110
      %v609 = vpop.permute.xlu0 %608
      %vm610 = vcmask 900096
      %v611 = vsel %vm610, %v605, %v607
      %v612 = vsel %vm610, %v607, %v609
      %616 = vst [vmem:[#allocation3 + $0x18] sm:$0xf0] %v611
      %617 = vst [vmem:[#allocation3 + $0x20] sm:$0xf0] %v612
      %618 = vst.msk [vmem:[#allocation3 + $0x28] sm:$0xf0] %vm566, %v609
      %v619 = vld [vmem:[#allocation2] sm:$0xff]
      %v620 = vld [vmem:[#allocation2 + $0x8] sm:$0xf]
      %623 = vst [vmem:[#allocation1] ss:$2 sm:$0xff] %v619
      %s624 = scalar_lea.vmem [#allocation1], 16
      %625 = vst [vmem:[%s624] ss:$2 sm:$0xff] %v620
      %v626 = vld.sshfl [vmem:[#allocation1] sm:$0xff pattern:$0x75316420]
      %v627 = vld.sshfl [vmem:[#allocation1 + $0x8] sm:$0xff pattern:$0x75316420]
      %v628 = vld.sshfl [vmem:[#allocation1 + $0x10] sm:$0xff pattern:$0x75316420]
      %629 = vrot.lane.b32.xlu0 %v626, 109
      %v630 = vpop.permute.xlu0 %629
      %631 = vrot.lane.b32.xlu0 %v627, 109
      %v632 = vpop.permute.xlu0 %631
      %633 = vrot.lane.b32.xlu0 %v628, 109
      %v634 = vpop.permute.xlu0 %633
      %vm635 = vcmask 891904
      %v636 = vsel %vm635, %v630, %v632
      %v637 = vsel %vm635, %v632, %v634
      %641 = vst [vmem:[#allocation3 + $0x30] sm:$0xf] %v636
      %642 = vst [vmem:[#allocation3 + $0x38] sm:$0xf] %v637
      %643 = vst.msk [vmem:[#allocation3 + $0x40] sm:$0xf] %vm540, %v634
      %v644 = vld [vmem:[#allocation2] sm:$0xff]
      %v645 = vld [vmem:[#allocation2 + $0x8] sm:$0xf]
      %s648 = scalar_lea.vmem [#allocation1], 1
      %649 = vst [vmem:[%s648] ss:$2 sm:$0xff] %v644
      %s650 = scalar_lea.vmem [#allocation1], 17
      %651 = vst [vmem:[%s650] ss:$2 sm:$0xff] %v645
      %v652 = vld.sshfl [vmem:[#allocation1] sm:$0xff pattern:$0x75316420]
      %v653 = vld.sshfl [vmem:[#allocation1 + $0x8] sm:$0xff pattern:$0x75316420]
      %v654 = vld.sshfl [vmem:[#allocation1 + $0x10] sm:$0xff pattern:$0x75316420]
      %655 = vrot.lane.b32.xlu0 %v652, 108
      %v656 = vpop.permute.xlu0 %655
      %657 = vrot.lane.b32.xlu0 %v653, 108
      %v658 = vpop.permute.xlu0 %657
      %659 = vrot.lane.b32.xlu0 %v654, 108
      %v660 = vpop.permute.xlu0 %659
      %vm661 = vcmask 883712
      %v662 = vsel %vm661, %v656, %v658
      %v663 = vsel %vm661, %v658, %v660
      %667 = vst [vmem:[#allocation3 + $0x30] sm:$0xf0] %v662
      %668 = vst [vmem:[#allocation3 + $0x38] sm:$0xf0] %v663
      %669 = vst.msk [vmem:[#allocation3 + $0x40] sm:$0xf0] %vm566, %v660
      %v670 = vld [vmem:[#allocation2] sm:$0xff]
      %v671 = vld [vmem:[#allocation2 + $0x8] sm:$0xf]
      %674 = vst [vmem:[#allocation1] ss:$2 sm:$0xff] %v670
      %s675 = scalar_lea.vmem [#allocation1], 16
      %676 = vst [vmem:[%s675] ss:$2 sm:$0xff] %v671
      %v677 = vld.sshfl [vmem:[#allocation1] sm:$0xff pattern:$0x75316420]
      %v678 = vld.sshfl [vmem:[#allocation1 + $0x8] sm:$0xff pattern:$0x75316420]
      %v679 = vld.sshfl [vmem:[#allocation1 + $0x10] sm:$0xff pattern:$0x75316420]
      %680 = vrot.lane.b32.xlu0 %v677, 92
      %v681 = vpop.permute.xlu0 %680
      %682 = vrot.lane.b32.xlu0 %v678, 92
      %v683 = vpop.permute.xlu0 %682
      %684 = vrot.lane.b32.xlu0 %v679, 92
      %v685 = vpop.permute.xlu0 %684
      %vm686 = vcmask 752640
      %v687 = vsel %vm686, %v681, %v683
      %v688 = vsel %vm686, %v683, %v685
      %692 = vst [vmem:[#allocation3 + $0x48] sm:$0xf] %v687
      %693 = vst [vmem:[#allocation3 + $0x50] sm:$0xf] %v688
      %694 = vst.msk [vmem:[#allocation3 + $0x58] sm:$0xf] %vm540, %v685
      %v695 = vld [vmem:[#allocation2] sm:$0xff]
      %v696 = vld [vmem:[#allocation2 + $0x8] sm:$0xf]
      %s699 = scalar_lea.vmem [#allocation1], 1
      %700 = vst [vmem:[%s699] ss:$2 sm:$0xff] %v695
      %s701 = scalar_lea.vmem [#allocation1], 17
      %702 = vst [vmem:[%s701] ss:$2 sm:$0xff] %v696
      %v703 = vld.sshfl [vmem:[#allocation1] sm:$0xff pattern:$0x75316420]
      %v704 = vld.sshfl [vmem:[#allocation1 + $0x8] sm:$0xff pattern:$0x75316420]
      %v705 = vld.sshfl [vmem:[#allocation1 + $0x10] sm:$0xff pattern:$0x75316420]
      %706 = vrot.lane.b32.xlu0 %v703, 91
      %v707 = vpop.permute.xlu0 %706
      %708 = vrot.lane.b32.xlu0 %v704, 91
      %v709 = vpop.permute.xlu0 %708
      %710 = vrot.lane.b32.xlu0 %v705, 91
      %v711 = vpop.permute.xlu0 %710
      %vm712 = vcmask 744448
      %v713 = vsel %vm712, %v707, %v709
      %v714 = vsel %vm712, %v709, %v711
      %718 = vst [vmem:[#allocation3 + $0x48] sm:$0xf0] %v713
      %719 = vst [vmem:[#allocation3 + $0x50] sm:$0xf0] %v714
      %720 = vst.msk [vmem:[#allocation3 + $0x58] sm:$0xf0] %vm566, %v711
      %v721 = vld [vmem:[#allocation2] sm:$0xff]
      %v722 = vld [vmem:[#allocation2 + $0x8] sm:$0xf]
      %725 = vst [vmem:[#allocation1] ss:$2 sm:$0xff] %v721
      %s726 = scalar_lea.vmem [#allocation1], 16
      %727 = vst [vmem:[%s726] ss:$2 sm:$0xff] %v722
      %v728 = vld.sshfl [vmem:[#allocation1] sm:$0xff pattern:$0x75316420]
      %v729 = vld.sshfl [vmem:[#allocation1 + $0x8] sm:$0xff pattern:$0x75316420]
      %v730 = vld.sshfl [vmem:[#allocation1 + $0x10] sm:$0xff pattern:$0x75316420]
      %731 = vrot.lane.b32.xlu0 %v728, 90
      %v732 = vpop.permute.xlu0 %731
      %733 = vrot.lane.b32.xlu0 %v729, 90
      %v734 = vpop.permute.xlu0 %733
      %735 = vrot.lane.b32.xlu0 %v730, 90
      %v736 = vpop.permute.xlu0 %735
      %vm737 = vcmask 736256
      %v738 = vsel %vm737, %v732, %v734
      %v739 = vsel %vm737, %v734, %v736
      %743 = vst [vmem:[#allocation3 + $0x60] sm:$0xf] %v738
      %744 = vst [vmem:[#allocation3 + $0x68] sm:$0xf] %v739
      %745 = vst.msk [vmem:[#allocation3 + $0x70] sm:$0xf] %vm540, %v736
      %v746 = vld [vmem:[%s1] sm:$0xff]
      %v747 = vld [vmem:[#allocation3] sm:$0xff]
      %v748 = vld [vmem:[#allocation3 + $0x8] sm:$0xff]
      %v749 = vld [vmem:[#allocation3 + $0x10] sm:$0xff]
      %v750 = vld [vmem:[#allocation3 + $0x18] sm:$0xff]
      %v751 = vld [vmem:[#allocation3 + $0x20] sm:$0xff]
      %v752 = vld [vmem:[#allocation3 + $0x28] sm:$0xff]
      %v753 = vld [vmem:[#allocation3 + $0x30] sm:$0xff]
      %v754 = vld [vmem:[#allocation3 + $0x38] sm:$0xff]
      %v755 = vld [vmem:[#allocation3 + $0x40] sm:$0xff]
      %v756 = vld [vmem:[#allocation3 + $0x48] sm:$0xff]
      %v757 = vld [vmem:[#allocation3 + $0x50] sm:$0xff]
      %v758 = vld [vmem:[#allocation3 + $0x58] sm:$0xff]
      %v759 = vld [vmem:[#allocation3 + $0x60] sm:$0xf]
      %v760 = vld [vmem:[#allocation3 + $0x68] sm:$0xf]
      %v761 = vld [vmem:[#allocation3 + $0x70] sm:$0xf]
      %v762 = vld [vmem:[%s2] sm:$0xff]
      %764 = vset.pattern.permute.xlu0 0
      %765 = vperm.xlu0 %764, %v762
      %v766 = vpop.permute.xlu0 %765
      %vm768 = vcmask 293888
      %v770 = vsel %vm768, %v746, 0
      %vm772 = vcmask 1043456
      %v774 = vsel %vm772, %v759, 0
      %v777 = vsel %vm772, %v760, 0
      %v780 = vsel %vm772, %v761, 0
      %782 = vmatpush.msra.mxu0 0.0
      %783 = vmatpush.msra.mxu0 0.0
      %784 = vmatpush.msra.mxu0 0.0
      %785 = vmatpush.msra.mxu0 0.0
      %786 = vmatpush.msra.mxu0 0.0
      %787 = vmatpush.msra.mxu0 0.0
      %788 = vmatpush.msra.mxu0 0.0
      %789 = vmatpush.msra.mxu0 0.0
      %790 = vmatpush.msra.mxu0 0.0
      %791 = vmatpush.msra.mxu0 0.0
      %792 = vmatpush.msra.mxu0 0.0
      %793 = vmatpush.msra.mxu0 %v774
      %794 = vmatpush.msra.mxu0 %v756
      %795 = vmatpush.msra.mxu0 %v753
      %796 = vmatpush.msra.mxu0 %v750
      %797 = vmatpush.msra.mxu0 %v747
      %798 = vmatmul.f32.gmra.mxu0 %v770
      %v799 = vpop.f32.mrf.mxu0
      %v800 = vadd.f32 %v766, %v799
      %801 = vdwg.mxu0
      %802 = vmatpush.msra.mxu0 0.0
      %803 = vmatpush.msra.mxu0 0.0
      %804 = vmatpush.msra.mxu0 0.0
      %805 = vmatpush.msra.mxu0 0.0
      %806 = vmatpush.msra.mxu0 0.0
      %807 = vmatpush.msra.mxu0 0.0
      %808 = vmatpush.msra.mxu0 0.0
      %809 = vmatpush.msra.mxu0 0.0
      %810 = vmatpush.msra.mxu0 0.0
      %811 = vmatpush.msra.mxu0 0.0
      %812 = vmatpush.msra.mxu0 0.0
      %813 = vmatpush.msra.mxu0 %v777
      %814 = vmatpush.msra.mxu0 %v757
      %815 = vmatpush.msra.mxu0 %v754
      %816 = vmatpush.msra.mxu0 %v751
      %817 = vmatpush.msra.mxu0 %v748
      %818 = vmatmul.f32.gmra.mxu0 %v770
      %v819 = vpop.f32.mrf.mxu0
      %v820 = vadd.f32 %v766, %v819
      %821 = vdwg.mxu0
      %822 = vmatpush.msra.mxu0 0.0
      %823 = vmatpush.msra.mxu0 0.0
      %824 = vmatpush.msra.mxu0 0.0
      %825 = vmatpush.msra.mxu0 0.0
      %826 = vmatpush.msra.mxu0 0.0
      %827 = vmatpush.msra.mxu0 0.0
      %828 = vmatpush.msra.mxu0 0.0
      %829 = vmatpush.msra.mxu0 0.0
      %830 = vmatpush.msra.mxu0 0.0
      %831 = vmatpush.msra.mxu0 0.0
      %832 = vmatpush.msra.mxu0 0.0
      %833 = vmatpush.msra.mxu0 %v780
      %834 = vmatpush.msra.mxu0 %v758
      %835 = vmatpush.msra.mxu0 %v755
      %836 = vmatpush.msra.mxu0 %v752
      %837 = vmatpush.msra.mxu0 %v749
      %838 = vmatmul.f32.gmra.mxu0 %v770
      %v839 = vpop.f32.mrf.mxu0
      %v840 = vadd.f32 %v766, %v839
      %841 = vdwg.mxu0
      %v842 = vmax.f32 %v800, 0.0
      %v843 = vmax.f32 %v820, 0.0
      %v844 = vmax.f32 %v840, 0.0
      %vm845 = vcmask 130048
      %846 = vst.msk [vmem:[%s170] sm:$0xff] %vm845, %v842
      %848 = vrot.lane.b32.xlu0 %v842, 126
      %v849 = vpop.permute.xlu0 %848
      %vm851 = vcmask 261248
      %852 = vst.msk [vmem:[%s170] sm:$0xff] %vm851, %v849
      %853 = vrot.lane.b32.xlu0 %v842, 124
      %v854 = vpop.permute.xlu0 %853
      %vm856 = vcmask 392448
      %857 = vst.msk [vmem:[%s170] sm:$0xff] %vm856, %v854
      %858 = vrot.lane.b32.xlu0 %v842, 122
      %v859 = vpop.permute.xlu0 %858
      %vm861 = vcmask 523648
      %862 = vst.msk [vmem:[%s170] sm:$0xff] %vm861, %v859
      %863 = vrot.lane.b32.xlu0 %v842, 120
      %v864 = vpop.permute.xlu0 %863
      %vm866 = vcmask 654848
      %867 = vst.msk [vmem:[%s170] sm:$0xff] %vm866, %v864
      %868 = vrot.lane.b32.xlu0 %v842, 118
      %v869 = vpop.permute.xlu0 %868
      %vm871 = vcmask 786048
      %872 = vst.msk [vmem:[%s170] sm:$0xff] %vm871, %v869
      %873 = vrot.lane.b32.xlu0 %v842, 116
      %v874 = vpop.permute.xlu0 %873
      %vm876 = vcmask 917248
      %877 = vst.msk [vmem:[%s170] sm:$0xff] %vm876, %v874
      %879 = vrot.lane.b32.xlu0 %v842, 114
      %v880 = vpop.permute.xlu0 %879
      %881 = vrot.lane.b32.xlu0 %v843, 114
      %v882 = vpop.permute.xlu0 %881
      %vm883 = vcmask 932864
      %v884 = vsel %vm883, %v880, %v882
      %vm886 = vcmask 1048448
      %887 = vst.msk [vmem:[%s170] sm:$0xff] %vm886, %v884
      %888 = vrot.lane.b32.xlu0 %v843, 112
      %v889 = vpop.permute.xlu0 %888
      %891 = vst.msk [vmem:[%s170 + $0x8] sm:$0xff] %vm845, %v889
      %892 = vrot.lane.b32.xlu0 %v843, 110
      %v893 = vpop.permute.xlu0 %892
      %895 = vst.msk [vmem:[%s170 + $0x8] sm:$0xff] %vm851, %v893
      %896 = vrot.lane.b32.xlu0 %v843, 108
      %v897 = vpop.permute.xlu0 %896
      %899 = vst.msk [vmem:[%s170 + $0x8] sm:$0xff] %vm856, %v897
      %900 = vrot.lane.b32.xlu0 %v843, 106
      %v901 = vpop.permute.xlu0 %900
      %903 = vst.msk [vmem:[%s170 + $0x8] sm:$0xff] %vm861, %v901
      %904 = vrot.lane.b32.xlu0 %v843, 104
      %v905 = vpop.permute.xlu0 %904
      %907 = vst.msk [vmem:[%s170 + $0x8] sm:$0xff] %vm866, %v905
      %908 = vrot.lane.b32.xlu0 %v843, 102
      %v909 = vpop.permute.xlu0 %908
      %911 = vst.msk [vmem:[%s170 + $0x8] sm:$0xff] %vm871, %v909
      %913 = vrot.lane.b32.xlu0 %v843, 100
      %v914 = vpop.permute.xlu0 %913
      %915 = vrot.lane.b32.xlu0 %v844, 100
      %v916 = vpop.permute.xlu0 %915
      %vm917 = vcmask 818176
      %v918 = vsel %vm917, %v914, %v916
      %920 = vst.msk [vmem:[%s170 + $0x8] sm:$0xff] %vm876, %v918
      %921 = vrot.lane.b32.xlu0 %v844, 98
      %v922 = vpop.permute.xlu0 %921
      %924 = vst.msk [vmem:[%s170 + $0x8] sm:$0xff] %vm886, %v922
      %p925 = scmp.lt.s32.totalorder %s14, 1
      %s926 = scalar_select %p925, %s14, 1
      %s927 = smul.addr %s926, 2
      %s928 = smul.addr %s927, 8
      %s929 = scalar_lea.vmem %s3, %s928
      // Predicated region
      $region33: #{conv_block_forward.1} parent=31 // pred_check
        %p930 = pneg %p100
      $region34: #{conv_block_forward.1} parent=31 // pred_check_branch
        %932 = sbr.rel (%p930) target = $region36
      $region35: #{conv_block_forward.1} parent=31 // pred_region
        _
      $region36: #{conv_block_forward.1} parent=31 // pred_fallthru
        _
    $region32: #{conv_block_forward.1} parent=5 // pred_fallthru
      _
    %p933 = scmp.le.s32.totalorder 2, %s9
    // Predicated region
    $region37: #{conv_block_forward.1} parent=5 // pred_check
      %p934 = pneg %p933
    $region38: #{conv_block_forward.1} parent=5 // pred_check_branch
      %936 = sbr.rel (%p934) target = $region40
    $region39: #{conv_block_forward.1} parent=5 // pred_region
      %s937 = ssub.s32 %s9, 2
      // Predicated region
      $region41: #{conv_block_forward.1} parent=39 // pred_check
        %p938 = pneg %p106
      $region42: #{conv_block_forward.1} parent=39 // pred_check_branch
        %940 = sbr.rel (%p938) target = $region44
      $region43: #{conv_block_forward.1} parent=39 // pred_region
        %p941 = scmp.lt.s32.totalorder %s15, 1
        %s942 = scalar_select %p941, %s15, 1
        %s943 = smul.addr %s942, 2
        %s944 = smul.addr %s943, 8
        %s945 = scalar_lea.vmem %s3, %s944
      $region44: #{conv_block_forward.1} parent=39 // pred_fallthru
        _
    $region40: #{conv_block_forward.1} parent=5 // pred_fallthru
      _
  $region6: #{conv_block_forward.1} parent=0 // loop_footer
    %s13 = sadd.s32 1, %s9
  $region7: #{conv_block_forward.1} parent=0 // loop_footer_branch
    %8 = sbr.rel target = $region3
  $region8: #{conv_block_forward.1} parent=0 // loop_exit
    _

</llo_original>
